<compile_context>
chip_gen: v7x
topology: tpu7x:2x2x1
jax: 0.10.0
libtpu: 0.0.40
codegen_flags: <defaults>
</compile_context>

<pallas_src>
import functools

import jax
import jax.numpy as jnp
from jax.experimental import pallas as pl
from jax.experimental.pallas import tpu as pltpu


def _round_up(x, m):
    return (x + m - 1) // m * m


def cbr_kernel(w_ref, p_ref, g_ref, b_ref, o_ref,
               conv_slab, sum_acc, sq_acc, scale_ref, bias_ref,
               *, inv_m, eps):
    """Fused conv(im2col matmul) -> BatchNorm(batch stats) -> ReLU.

    Grid = (phase, tile):
      phase 0: conv tile (bf16 in, f32 acc on the MXU) -> VMEM slab;
               elementwise sum / sum-of-squares accumulation (VPU only).
      phase 1: step 0 reduces the stats once and stores the folded scale/bias;
               every step reads its slab tile, applies scale/bias + ReLU and
               writes the lane-dense output tile.
    """
    phase = pl.program_id(0)
    i = pl.program_id(1)

    @pl.when(phase == 0)
    def _():
        @pl.when(i == 0)
        def _():
            sum_acc[...] = jnp.zeros_like(sum_acc)
            sq_acc[...] = jnp.zeros_like(sq_acc)

        conv = jnp.dot(w_ref[...], p_ref[...],
                       preferred_element_type=jnp.float32)      # (Csub, TM)
        conv_slab[i] = conv
        # Padded K rows / padded M columns are exact zeros, so unmasked
        # elementwise accumulation keeps the statistics exact (we divide by the
        # true element count M, not Mpad).
        sum_acc[...] += conv
        sq_acc[...] += conv * conv

    @pl.when(phase == 1)
    def _():
        @pl.when(i == 0)
        def _():
            # One lane reduction total (hoisted out of the per-tile loop).
            s = jnp.sum(sum_acc[...], axis=1, keepdims=True)     # (Csub, 1)
            sq = jnp.sum(sq_acc[...], axis=1, keepdims=True)
            mean = s * inv_m
            var = jnp.maximum(sq * inv_m - mean * mean, 0.0)
            scale = jax.lax.rsqrt(var + eps) * g_ref[...]
            scale_ref[:, 0:1] = scale
            bias_ref[:, 0:1] = b_ref[...] - mean * scale

        conv = conv_slab[i]
        o_ref[...] = jnp.maximum(conv * scale_ref[:, 0:1] + bias_ref[:, 0:1], 0.0)


def cbr_forward(x, weight, gamma, beta, *, stride=1, eps=1e-3):
    """x: (N, Cin, D, H, W); weight: (nOut, Cin, k, k, k); gamma/beta: (nOut,)."""
    N, Cin, D, H, W = x.shape
    nOut, _, k, _, _ = weight.shape
    pad = (k - 1) // 2
    Do = (D + 2 * pad - k) // stride + 1
    Ho = (H + 2 * pad - k) // stride + 1
    Wo = (W + 2 * pad - k) // stride + 1

    M = N * Do * Ho * Wo
    K = Cin * k ** 3

    # ---- im2col glue: build patches^T of shape (K, M) in bf16 ---------------
    # K order: offset-major, Cin-minor.  Only a leading-dim (N <-> Cin) swap is
    # needed; no minor-dim (channels-last) transpose.
    xp = jnp.pad(x, ((0, 0), (0, 0), (pad, pad), (pad, pad), (pad, pad)))
    xp = jnp.transpose(xp, (1, 0, 2, 3, 4)).astype(jnp.bfloat16)  # (Cin, N, Dp, Hp, Wp)
    rows = []
    for kd in range(k):
        for kh in range(k):
            for kw in range(k):
                rows.append(xp[:, :, kd:kd + Do * stride:stride,
                                     kh:kh + Ho * stride:stride,
                                     kw:kw + Wo * stride:stride].reshape(Cin, M))
    patT = jnp.concatenate(rows, axis=0)                          # (K, M)

    # Weight flattened to (nOut, K) with the same (offset-major, Cin-minor) order.
    w2 = jnp.transpose(weight, (0, 2, 3, 4, 1)).reshape(nOut, K).astype(jnp.bfloat16)

    # TPU-friendly padding: channels only to 8 sublanes, K to 128 lanes (MXU
    # contraction), M tiled on the lane axis (>=256-wide tiles fill the MXU on
    # v6e/v7x).  Zero padding keeps both the conv and the BN stats exact.
    Csub = _round_up(nOut, 8)
    Kpad = _round_up(K, 128)
    TM = min(512, _round_up(M, 128))
    Mpad = _round_up(M, TM)
    n_tiles = Mpad // TM

    patT_p = jnp.pad(patT, ((0, Kpad - K), (0, Mpad - M)))
    w_p = jnp.pad(w2, ((0, Csub - nOut), (0, Kpad - K)))
    g_p = jnp.pad(gamma.astype(jnp.float32).reshape(nOut, 1), ((0, Csub - nOut), (0, 0)))
    b_p = jnp.pad(beta.astype(jnp.float32).reshape(nOut, 1), ((0, Csub - nOut), (0, 0)))

    out = pl.pallas_call(
        functools.partial(cbr_kernel, inv_m=1.0 / float(M), eps=float(eps)),
        out_shape=jax.ShapeDtypeStruct((Csub, Mpad), jnp.float32),
        grid=(2, n_tiles),
        in_specs=[
            pl.BlockSpec((Csub, Kpad), lambda p, i: (0, 0)),           # weights (resident)
            pl.BlockSpec((Kpad, TM), lambda p, i: (0, i * (1 - p))),   # patch tiles (phase 0)
            pl.BlockSpec((Csub, 1), lambda p, i: (0, 0)),              # gamma
            pl.BlockSpec((Csub, 1), lambda p, i: (0, 0)),              # beta
        ],
        out_specs=pl.BlockSpec((Csub, TM), lambda p, i: (0, i * p)),   # written in phase 1
        scratch_shapes=[
            pltpu.VMEM((n_tiles, Csub, TM), jnp.float32),  # resident conv slab
            pltpu.VMEM((Csub, TM), jnp.float32),           # elementwise sum accumulator
            pltpu.VMEM((Csub, TM), jnp.float32),           # elementwise sumsq accumulator
            pltpu.VMEM((Csub, 128), jnp.float32),          # folded BN scale (col 0)
            pltpu.VMEM((Csub, 128), jnp.float32),          # folded BN bias  (col 0)
        ],
        compiler_params=pltpu.CompilerParams(
            dimension_semantics=("arbitrary", "arbitrary")),
    )(w_p, patT_p, g_p, b_p)

    # Un-pad; leading-dim swap back to NCDHW (cheap: minor dims untouched).
    y = out[:nOut, :M].reshape(nOut, N, Do, Ho, Wo).transpose(1, 0, 2, 3, 4)
    return y


def cbr_reference(x, weight, gamma, beta, *, stride=1, eps=1e-3):
    pad = (weight.shape[2] - 1) // 2
    conv = jax.lax.conv_general_dilated(
        x, weight, window_strides=(stride,) * 3,
        padding=[(pad, pad)] * 3,
        dimension_numbers=("NCDHW", "OIDHW", "NCDHW"))
    mean = conv.mean(axis=(0, 2, 3, 4), keepdims=True)
    var = ((conv - mean) ** 2).mean(axis=(0, 2, 3, 4), keepdims=True)
    g = gamma.reshape(1, -1, 1, 1, 1)
    b = beta.reshape(1, -1, 1, 1, 1)
    return jnp.maximum((conv - mean) / jnp.sqrt(var + eps) * g + b, 0.0)


if __name__ == "__main__":
    # Module config: CBR(nIn=4, nOut=8, kSize=3, stride=1)
    nIn, nOut, kSize, stride = 4, 8, 3, 1
    N, D, H, W = 2, 8, 8, 8
    eps = 0.001  # BatchNorm3d eps from the module

    key = jax.random.PRNGKey(0)
    kx, kw = jax.random.split(key)
    x = jax.random.normal(kx, (N, nIn, D, H, W), dtype=jnp.float32)
    fan_in = nIn * kSize ** 3
    weight = jax.random.normal(kw, (nOut, nIn, kSize, kSize, kSize),
                               dtype=jnp.float32) * (1.0 / jnp.sqrt(fan_in))
    gamma = jnp.ones((nOut,), jnp.float32)   # PyTorch BN default weight
    beta = jnp.zeros((nOut,), jnp.float32)   # PyTorch BN default bias

    fwd = jax.jit(functools.partial(cbr_forward, stride=stride, eps=eps))
    y = fwd(x, weight, gamma, beta)
    y = jax.block_until_ready(y)

    y_ref = cbr_reference(x, weight, gamma, beta, stride=stride, eps=eps)
    max_err = float(jnp.max(jnp.abs(y - y_ref)))
    assert y.shape == (N, nOut, D, H, W), y.shape
    assert max_err < 5e-2, f"max abs error too large: {max_err}"

    print("KERNEL_OK")
</pallas_src>

<mosaic_0001>
module attributes {stable_mosaic.version = 11 : i64} {
  func.func @cbr_kernel(%arg0: i32, %arg1: i32, %arg2: memref<8x128xbf16, #tpu.memory_space<vmem>>, %arg3: memref<128x512xbf16, #tpu.memory_space<vmem>>, %arg4: memref<8x1xf32, #tpu.memory_space<vmem>>, %arg5: memref<8x1xf32, #tpu.memory_space<vmem>>, %arg6: memref<8x512xf32, #tpu.memory_space<vmem>>, %arg7: memref<2x8x512xf32, #tpu.memory_space<vmem>>, %arg8: memref<8x512xf32, #tpu.memory_space<vmem>>, %arg9: memref<8x512xf32, #tpu.memory_space<vmem>>, %arg10: memref<8x128xf32, #tpu.memory_space<vmem>>, %arg11: memref<8x128xf32, #tpu.memory_space<vmem>>) attributes {dimension_semantics = [#tpu.dimension_semantics<arbitrary>, #tpu.dimension_semantics<arbitrary>], iteration_bounds = array<i64: 2, 2>, scalar_prefetch = 0 : i64, scratch_operands = 5 : i64, tpu.core_type = #tpu.core_type<tc>, window_params = [{pipeline_mode = #tpu.pipeline_mode<synchronous>, transform_indices = @transform_0, window_bounds = array<i64: 8, 128>}, {transform_indices = @transform_1, window_bounds = array<i64: 128, 512>}, {pipeline_mode = #tpu.pipeline_mode<synchronous>, transform_indices = @transform_2, window_bounds = array<i64: 8, 1>}, {pipeline_mode = #tpu.pipeline_mode<synchronous>, transform_indices = @transform_3, window_bounds = array<i64: 8, 1>}, {transform_indices = @transform_4, window_bounds = array<i64: 8, 512>}]} {
    %c0_i32 = arith.constant 0 : i32
    %0 = arith.cmpi eq, %arg0, %c0_i32 : i32
    %1 = arith.extui %0 : i1 to i32
    %c0_i32_0 = arith.constant 0 : i32
    %2 = arith.cmpi ne, %1, %c0_i32_0 : i32
    scf.if %2 {
      %c0_i32_2 = arith.constant 0 : i32
      %6 = arith.cmpi eq, %arg1, %c0_i32_2 : i32
      %7 = arith.extui %6 : i1 to i32
      %c0_i32_3 = arith.constant 0 : i32
      %8 = arith.cmpi ne, %7, %c0_i32_3 : i32
      scf.if %8 {
        %cst_17 = arith.constant 0.000000e+00 : f32
        %23 = vector.broadcast %cst_17 : f32 to vector<8x512xf32>
        %c0_18 = arith.constant 0 : index
        %c0_19 = arith.constant 0 : index
        %24 = vector.load %arg8[%c0_18, %c0_19] : memref<8x512xf32, #tpu.memory_space<vmem>>, vector<8x512xf32>
        tpu.vector_store %arg8[%c0_18, %c0_19], %23 {strides = array<i32>} : memref<8x512xf32, #tpu.memory_space<vmem>>, vector<8x512xf32>,
        %cst_20 = arith.constant 0.000000e+00 : f32
        %25 = vector.broadcast %cst_20 : f32 to vector<8x512xf32>
        %c0_21 = arith.constant 0 : index
        %c0_22 = arith.constant 0 : index
        %26 = vector.load %arg9[%c0_21, %c0_22] : memref<8x512xf32, #tpu.memory_space<vmem>>, vector<8x512xf32>
        tpu.vector_store %arg9[%c0_21, %c0_22], %25 {strides = array<i32>} : memref<8x512xf32, #tpu.memory_space<vmem>>, vector<8x512xf32>,
      } else {
      }
      %c0 = arith.constant 0 : index
      %c0_4 = arith.constant 0 : index
      %9 = vector.load %arg2[%c0, %c0_4] : memref<8x128xbf16, #tpu.memory_space<vmem>>, vector<8x128xbf16>
      %c0_5 = arith.constant 0 : index
      %c0_6 = arith.constant 0 : index
      %10 = vector.load %arg3[%c0_5, %c0_6] : memref<128x512xbf16, #tpu.memory_space<vmem>>, vector<128x512xbf16>
      %cst = arith.constant dense<0.000000e+00> : vector<8x512xf32>
      %11 = tpu.matmul %9, %10, %cst {dimension_numbers = #tpu.dot_dimension_numbers<[1], [0], [0], [1], [0, 0, 1, 1], [], []>} : vector<8x128xbf16>, vector<128x512xbf16>, vector<8x512xf32> -> vector<8x512xf32>
      %12 = arith.index_cast %arg1 : i32 to index
      %c0_7 = arith.constant 0 : index
      %c0_8 = arith.constant 0 : index
      %13 = vector.load %arg7[%12, %c0_7, %c0_8] : memref<2x8x512xf32, #tpu.memory_space<vmem>>, vector<1x8x512xf32>
      %14 = vector.shape_cast %13 : vector<1x8x512xf32> to vector<8x512xf32>
      %15 = vector.shape_cast %11 : vector<8x512xf32> to vector<1x8x512xf32>
      tpu.vector_store %arg7[%12, %c0_7, %c0_8], %15 {strides = array<i32>} : memref<2x8x512xf32, #tpu.memory_space<vmem>>, vector<1x8x512xf32>,
      %c0_9 = arith.constant 0 : index
      %c0_10 = arith.constant 0 : index
      %16 = vector.load %arg8[%c0_9, %c0_10] : memref<8x512xf32, #tpu.memory_space<vmem>>, vector<8x512xf32>
      %17 = arith.addf %16, %11 : vector<8x512xf32>
      %c0_11 = arith.constant 0 : index
      %c0_12 = arith.constant 0 : index
      %18 = vector.load %arg8[%c0_11, %c0_12] : memref<8x512xf32, #tpu.memory_space<vmem>>, vector<8x512xf32>
      tpu.vector_store %arg8[%c0_11, %c0_12], %17 {strides = array<i32>} : memref<8x512xf32, #tpu.memory_space<vmem>>, vector<8x512xf32>,
      %c0_13 = arith.constant 0 : index
      %c0_14 = arith.constant 0 : index
      %19 = vector.load %arg9[%c0_13, %c0_14] : memref<8x512xf32, #tpu.memory_space<vmem>>, vector<8x512xf32>
      %20 = arith.mulf %11, %11 : vector<8x512xf32>
      %21 = arith.addf %19, %20 : vector<8x512xf32>
      %c0_15 = arith.constant 0 : index
      %c0_16 = arith.constant 0 : index
      %22 = vector.load %arg9[%c0_15, %c0_16] : memref<8x512xf32, #tpu.memory_space<vmem>>, vector<8x512xf32>
      tpu.vector_store %arg9[%c0_15, %c0_16], %21 {strides = array<i32>} : memref<8x512xf32, #tpu.memory_space<vmem>>, vector<8x512xf32>,
    } else {
    }
    %c1_i32 = arith.constant 1 : i32
    %3 = arith.cmpi eq, %arg0, %c1_i32 : i32
    %4 = arith.extui %3 : i1 to i32
    %c0_i32_1 = arith.constant 0 : i32
    %5 = arith.cmpi ne, %4, %c0_i32_1 : i32
    scf.if %5 {
      %c0_i32_2 = arith.constant 0 : i32
      %6 = arith.cmpi eq, %arg1, %c0_i32_2 : i32
      %7 = arith.extui %6 : i1 to i32
      %c0_i32_3 = arith.constant 0 : i32
      %8 = arith.cmpi ne, %7, %c0_i32_3 : i32
      scf.if %8 {
        %c0_11 = arith.constant 0 : index
        %c0_12 = arith.constant 0 : index
        %21 = vector.load %arg8[%c0_11, %c0_12] : memref<8x512xf32, #tpu.memory_space<vmem>>, vector<8x512xf32>
        %cst_13 = arith.constant dense<0.000000e+00> : vector<8xf32>
        %22 = vector.multi_reduction <add>, %21, %cst_13 [1] : vector<8x512xf32> to vector<8xf32>
        %23 = vector.shape_cast %22 : vector<8xf32> to vector<8x1xf32>
        %c0_14 = arith.constant 0 : index
        %c0_15 = arith.constant 0 : index
        %24 = vector.load %arg9[%c0_14, %c0_15] : memref<8x512xf32, #tpu.memory_space<vmem>>, vector<8x512xf32>
        %cst_16 = arith.constant dense<0.000000e+00> : vector<8xf32>
        %25 = vector.multi_reduction <add>, %24, %cst_16 [1] : vector<8x512xf32> to vector<8xf32>
        %26 = vector.shape_cast %25 : vector<8xf32> to vector<8x1xf32>
        %cst_17 = arith.constant 9.765625E-4 : f32
        %27 = vector.broadcast %cst_17 : f32 to vector<8x1xf32>
        %28 = arith.mulf %23, %27 : vector<8x1xf32>
        %cst_18 = arith.constant 9.765625E-4 : f32
        %29 = vector.broadcast %cst_18 : f32 to vector<8x1xf32>
        %30 = arith.mulf %26, %29 : vector<8x1xf32>
        %31 = arith.mulf %28, %28 : vector<8x1xf32>
        %32 = arith.subf %30, %31 : vector<8x1xf32>
        %cst_19 = arith.constant 0.000000e+00 : f32
        %33 = vector.broadcast %cst_19 : f32 to vector<8x1xf32>
        %34 = arith.maximumf %32, %33 : vector<8x1xf32>
        %cst_20 = arith.constant 1.000000e-03 : f32
        %35 = vector.broadcast %cst_20 : f32 to vector<8x1xf32>
        %36 = arith.addf %34, %35 : vector<8x1xf32>
        %37 = math.rsqrt %36 : vector<8x1xf32>
        %c0_21 = arith.constant 0 : index
        %c0_22 = arith.constant 0 : index
        %38 = vector.load %arg4[%c0_21, %c0_22] : memref<8x1xf32, #tpu.memory_space<vmem>>, vector<8x1xf32>
        %39 = arith.mulf %37, %38 : vector<8x1xf32>
        %c0_23 = arith.constant 0 : index
        %c0_24 = arith.constant 0 : index
        %40 = vector.load %arg10[%c0_23, %c0_24] : memref<8x128xf32, #tpu.memory_space<vmem>>, vector<8x1xf32>
        tpu.vector_store %arg10[%c0_23, %c0_24], %39 {strides = array<i32>} : memref<8x128xf32, #tpu.memory_space<vmem>>, vector<8x1xf32>,
        %c0_25 = arith.constant 0 : index
        %c0_26 = arith.constant 0 : index
        %41 = vector.load %arg5[%c0_25, %c0_26] : memref<8x1xf32, #tpu.memory_space<vmem>>, vector<8x1xf32>
        %42 = arith.mulf %28, %39 : vector<8x1xf32>
        %43 = arith.subf %41, %42 : vector<8x1xf32>
        %c0_27 = arith.constant 0 : index
        %c0_28 = arith.constant 0 : index
        %44 = vector.load %arg11[%c0_27, %c0_28] : memref<8x128xf32, #tpu.memory_space<vmem>>, vector<8x1xf32>
        tpu.vector_store %arg11[%c0_27, %c0_28], %43 {strides = array<i32>} : memref<8x128xf32, #tpu.memory_space<vmem>>, vector<8x1xf32>,
      } else {
      }
      %9 = arith.index_cast %arg1 : i32 to index
      %c0 = arith.constant 0 : index
      %c0_4 = arith.constant 0 : index
      %10 = vector.load %arg7[%9, %c0, %c0_4] : memref<2x8x512xf32, #tpu.memory_space<vmem>>, vector<1x8x512xf32>
      %11 = vector.shape_cast %10 : vector<1x8x512xf32> to vector<8x512xf32>
      %c0_5 = arith.constant 0 : index
      %c0_6 = arith.constant 0 : index
      %12 = vector.load %arg10[%c0_5, %c0_6] : memref<8x128xf32, #tpu.memory_space<vmem>>, vector<8x1xf32>
      %13 = vector.broadcast %12 : vector<8x1xf32> to vector<8x512xf32>
      %14 = arith.mulf %11, %13 : vector<8x512xf32>
      %c0_7 = arith.constant 0 : index
      %c0_8 = arith.constant 0 : index
      %15 = vector.load %arg11[%c0_7, %c0_8] : memref<8x128xf32, #tpu.memory_space<vmem>>, vector<8x1xf32>
      %16 = vector.broadcast %15 : vector<8x1xf32> to vector<8x512xf32>
      %17 = arith.addf %14, %16 : vector<8x512xf32>
      %cst = arith.constant 0.000000e+00 : f32
      %18 = vector.broadcast %cst : f32 to vector<8x512xf32>
      %19 = arith.maximumf %17, %18 : vector<8x512xf32>
      %c0_9 = arith.constant 0 : index
      %c0_10 = arith.constant 0 : index
      %20 = vector.load %arg6[%c0_9, %c0_10] : memref<8x512xf32, #tpu.memory_space<vmem>>, vector<8x512xf32>
      tpu.vector_store %arg6[%c0_9, %c0_10], %19 {strides = array<i32>} : memref<8x512xf32, #tpu.memory_space<vmem>>, vector<8x512xf32>,
    } else {
    }
    return
  }
  func.func @transform_0(%arg0: i32, %arg1: i32) -> (i32, i32) {
    %c0_i32 = arith.constant 0 : i32
    %c0_i32_0 = arith.constant 0 : i32
    %c0_i32_1 = arith.constant 0 : i32
    return %c0_i32, %c0_i32_0 : i32, i32
  }
  func.func @transform_1(%arg0: i32, %arg1: i32) -> (i32, i32) {
    %c1_i32 = arith.constant 1 : i32
    %0 = arith.subi %c1_i32, %arg0 : i32
    %1 = arith.muli %arg1, %0 : i32
    %c0_i32 = arith.constant 0 : i32
    %c0_i32_0 = arith.constant 0 : i32
    return %c0_i32, %1 : i32, i32
  }
  func.func @transform_2(%arg0: i32, %arg1: i32) -> (i32, i32) {
    %c0_i32 = arith.constant 0 : i32
    %c0_i32_0 = arith.constant 0 : i32
    %c0_i32_1 = arith.constant 0 : i32
    return %c0_i32, %c0_i32_0 : i32, i32
  }
  func.func @transform_3(%arg0: i32, %arg1: i32) -> (i32, i32) {
    %c0_i32 = arith.constant 0 : i32
    %c0_i32_0 = arith.constant 0 : i32
    %c0_i32_1 = arith.constant 0 : i32
    return %c0_i32, %c0_i32_0 : i32, i32
  }
  func.func @transform_4(%arg0: i32, %arg1: i32) -> (i32, i32) {
    %0 = arith.muli %arg1, %arg0 : i32
    %c0_i32 = arith.constant 0 : i32
    %c0_i32_0 = arith.constant 0 : i32
    return %c0_i32, %0 : i32, i32
  }
}

</mosaic_0001>

<llo_original>
// kernel: cbr_forward.1
$region0: #{cbr_forward.1}
  #allocation0 [shape = 'u32[]', space=smem, size = 0x4, offset = 0x4, fixed_abs, tag = 'smem constant byte address 0x4 - core index']
  #allocation1 [shape = 'u32[144,128]{1,0:T(1,128)}', space=vmem, size = 0x12000, scoped, tag = 'internal scratch']
  #allocation2 [shape = 'f32[2,8,512]{2,1,0:T(8,128)}', space=vmem, size = 0x8000, scoped, tag = 'scratch operand']
  #allocation3 [shape = 'f32[8,512]{1,0:T(8,128)}', space=vmem, size = 0x4000, scoped, tag = 'scratch operand']
  #allocation4 [shape = 'f32[8,512]{1,0:T(8,128)}', space=vmem, size = 0x4000, scoped, tag = 'scratch operand']
  #allocation5 [shape = 'f32[8,128]{1,0:T(8,128)}', space=vmem, size = 0x1000, scoped, tag = 'scratch operand']
  #allocation6 [shape = 'f32[8,128]{1,0:T(8,128)}', space=vmem, size = 0x1000, scoped, tag = 'scratch operand']
  %s0 = inlined_call_operand.vmem [shape: bf16[8,128], index: 0, kind: input, shape index: {}]
  %s1 = inlined_call_operand.vmem [shape: bf16[128,1024], index: 1, kind: input, shape index: {}]
  %s2 = inlined_call_operand.vmem [shape: f32[8,1], index: 2, kind: input, shape index: {}]
  %s3 = inlined_call_operand.vmem [shape: f32[8,1], index: 3, kind: input, shape index: {}]
  %s4 = inlined_call_operand.vmem [shape: f32[8,1024], index: 4, kind: output, shape index: {}]
  %s5 = sld [smem:[#allocation0]]
  $region88: #{cbr_forward.1} parent=0
    _
  %s7 = ssub.s32 1, %s5
  %s8 = scalar_select 0, %s7, %s5
  $region1: #{cbr_forward.1} parent=0
    #allocation7 [shape = 'u8[262144]{0}', space=vmem, size = 0x40000, scoped, tag = 'input window, operand 1']
    loop: start=0, step=1, limit=6
    $region2: #{cbr_forward.1} parent=1 // loop_pre_header
      _
    $region3: #{cbr_forward.1} parent=1 // loop_header
      %s10 = sphi 0, %s14
      %p11 = scmp.ge.s32.totalorder %s10, 6
      %s17 = sphi 0, %s29
      %s18 = sphi 0, %s25
      %s19 = sphi 0, %s17
      %s20 = sphi 0, %s18
      %s21 = sphi 0, %s19
      %s22 = sphi 0, %s20
      %s30 = sphi 0, %s30
      %s32 = sphi 0, %s30
      %s33 = sphi 0, %s32
      %s47 = sphi 0, %s33
      %s57 = sphi 0, %s59
      %s60 = sphi 0, %s57
      %s61 = sphi 0, %s60
      %s77 = sphi 0, %s61
      %s81 = sphi 0, %s81
      %s83 = sphi 0, %s81
      %s84 = sphi 0, %s83
      %s98 = sphi 0, %s84
      %s102 = sphi 0, %s102
      %s104 = sphi 0, %s102
      %s105 = sphi 0, %s104
      %s119 = sphi 0, %s105
      %s127 = sphi 0, %s129
      %s130 = sphi 0, %s127
      %s131 = sphi 0, %s130
      %s147 = sphi 0, %s131
    $region4: #{cbr_forward.1} parent=1 // loop_header_branch
      %13 = sbr.rel (%p11) target = $region8
    $region5: #{cbr_forward.1} parent=1 // loop_body
      %s15 = ssub.s32 %s10, 1
      %s16 = ssub.s32 %s10, 2
      %s23 = sadd.s32 1, %s18
      %p24 = scmp.ge.s32.totalorder %s23, 2
      %s25 = scalar_select %p24, 0, %s23
      %s26 = sadd.s32 1, %s17
      %s27 = scalar_select %p24, %s26, %s17
      %p28 = scmp.ge.s32.totalorder %s27, 2
      %s29 = scalar_select %p28, 0, %s27
      %s31 = sadd.s32 %s30, 1
      %p34 = scmp.eq.s32.totalorder %s10, 3
      %p35 = scmp.ne.s32.totalorder %s30, %s32
      %p36 = scmp.eq.s32.totalorder %s10, 0
      %p37 = por %p35, %p36
      %p38 = scmp.ne.s32.totalorder %s30, %s32
      %p39 = scmp.eq.s32.totalorder %s15, 3
      %p40 = por %p38, %p39
      %p41 = scmp.ne.s32.totalorder %s32, %s33
      %p42 = scmp.eq.s32.totalorder %s15, 0
      %p43 = por %p41, %p42
      %p44 = scmp.ne.s32.totalorder %s32, %s33
      %p45 = scmp.eq.s32.totalorder %s16, 3
      %p46 = por %p44, %p45
      %p48 = scmp.ne.s32.totalorder %s33, %s47
      %p49 = scmp.eq.s32.totalorder %s16, 0
      %p50 = por %p48, %p49
      %s51 = ssub.s32 1, %s17
      %s52 = smul.u32 %s18, %s51
      %s53 = ssub.s32 1, %s29
      %s54 = smul.u32 %s25, %s53
      %s55 = ssub.s32 %s52, %s54
      %p56 = scmp.eq.s32.totalorder %s55, 0
      %s58 = sadd.s32 %s57, 1
      %s59 = scalar_select %p56, %s57, %s58
      %p62 = pneg %p56
      %p63 = scmp.eq.s32.totalorder %s10, 3
      %p64 = por %p62, %p63
      %p65 = scmp.ne.s32.totalorder %s57, %s60
      %p66 = scmp.eq.s32.totalorder %s10, 0
      %p67 = por %p65, %p66
      %p68 = scmp.ne.s32.totalorder %s57, %s60
      %p69 = scmp.eq.s32.totalorder %s15, 3
      %p70 = por %p68, %p69
      %p71 = scmp.ne.s32.totalorder %s60, %s61
      %p72 = scmp.eq.s32.totalorder %s15, 0
      %p73 = por %p71, %p72
      %p74 = scmp.ne.s32.totalorder %s60, %s61
      %p75 = scmp.eq.s32.totalorder %s16, 3
      %p76 = por %p74, %p75
      %p78 = scmp.ne.s32.totalorder %s61, %s77
      %p79 = scmp.eq.s32.totalorder %s16, 0
      %p80 = por %p78, %p79
      %s82 = sadd.s32 %s81, 1
      %p85 = scmp.eq.s32.totalorder %s10, 3
      %p86 = scmp.ne.s32.totalorder %s81, %s83
      %p87 = scmp.eq.s32.totalorder %s10, 0
      %p88 = por %p86, %p87
      %p89 = scmp.ne.s32.totalorder %s81, %s83
      %p90 = scmp.eq.s32.totalorder %s15, 3
      %p91 = por %p89, %p90
      %p92 = scmp.ne.s32.totalorder %s83, %s84
      %p93 = scmp.eq.s32.totalorder %s15, 0
      %p94 = por %p92, %p93
      %p95 = scmp.ne.s32.totalorder %s83, %s84
      %p96 = scmp.eq.s32.totalorder %s16, 3
      %p97 = por %p95, %p96
      %p99 = scmp.ne.s32.totalorder %s84, %s98
      %p100 = scmp.eq.s32.totalorder %s16, 0
      %p101 = por %p99, %p100
      %s103 = sadd.s32 %s102, 1
      %p106 = scmp.eq.s32.totalorder %s10, 3
      %p107 = scmp.ne.s32.totalorder %s102, %s104
      %p108 = scmp.eq.s32.totalorder %s10, 0
      %p109 = por %p107, %p108
      %p110 = scmp.ne.s32.totalorder %s102, %s104
      %p111 = scmp.eq.s32.totalorder %s15, 3
      %p112 = por %p110, %p111
      %p113 = scmp.ne.s32.totalorder %s104, %s105
      %p114 = scmp.eq.s32.totalorder %s15, 0
      %p115 = por %p113, %p114
      %p116 = scmp.ne.s32.totalorder %s104, %s105
      %p117 = scmp.eq.s32.totalorder %s16, 3
      %p118 = por %p116, %p117
      %p120 = scmp.ne.s32.totalorder %s105, %s119
      %p121 = scmp.eq.s32.totalorder %s16, 0
      %p122 = por %p120, %p121
      %s123 = smul.u32 %s18, %s17
      %s124 = smul.u32 %s25, %s29
      %s125 = ssub.s32 %s123, %s124
      %p126 = scmp.eq.s32.totalorder %s125, 0
      %s128 = sadd.s32 %s127, 1
      %s129 = scalar_select %p126, %s127, %s128
      %p132 = pneg %p126
      %p133 = scmp.eq.s32.totalorder %s10, 3
      %p134 = por %p132, %p133
      %p135 = scmp.ne.s32.totalorder %s127, %s130
      %p136 = scmp.eq.s32.totalorder %s10, 0
      %p137 = por %p135, %p136
      %p138 = scmp.ne.s32.totalorder %s127, %s130
      %p139 = scmp.eq.s32.totalorder %s15, 3
      %p140 = por %p138, %p139
      %p141 = scmp.ne.s32.totalorder %s130, %s131
      %p142 = scmp.eq.s32.totalorder %s15, 0
      %p143 = por %p141, %p142
      %p144 = scmp.ne.s32.totalorder %s130, %s131
      %p145 = scmp.eq.s32.totalorder %s16, 3
      %p146 = por %p144, %p145
      %p148 = scmp.ne.s32.totalorder %s131, %s147
      %p149 = scmp.eq.s32.totalorder %s16, 0
      %p150 = por %p148, %p149
      %p151 = scmp.le.s32.totalorder 1, %s10
      %p152 = scmp.lt.s32.totalorder %s10, 5
      %p153 = pnand %p151, %p152
      %p154 = pneg %p153
      // Predicated region
      $region9: #{cbr_forward.1} parent=5 // pred_check
        _
      $region10: #{cbr_forward.1} parent=5 // pred_check_branch
        %156 = sbr.rel (%p153) target = $region12
      $region11: #{cbr_forward.1} parent=5 // pred_region
        %s157 = ssub.s32 %s10, 1
        // Predicated region
        $region13: #{cbr_forward.1} parent=11 // pred_check
          %p158 = pneg %p43
        $region14: #{cbr_forward.1} parent=11 // pred_check_branch
          %160 = sbr.rel (%p158) target = $region16
        $region15: #{cbr_forward.1} parent=11 // pred_region
          _
        $region16: #{cbr_forward.1} parent=11 // pred_fallthru
          _
        // Predicated region
        $region17: #{cbr_forward.1} parent=11 // pred_check
          %p161 = pneg %p94
        $region18: #{cbr_forward.1} parent=11 // pred_check_branch
          %163 = sbr.rel (%p161) target = $region20
        $region19: #{cbr_forward.1} parent=11 // pred_region
          _
        $region20: #{cbr_forward.1} parent=11 // pred_fallthru
          _
        // Predicated region
        $region21: #{cbr_forward.1} parent=11 // pred_check
          %p164 = pneg %p115
        $region22: #{cbr_forward.1} parent=11 // pred_check_branch
          %166 = sbr.rel (%p164) target = $region24
        $region23: #{cbr_forward.1} parent=11 // pred_region
          _
        $region24: #{cbr_forward.1} parent=11 // pred_fallthru
          _
      $region12: #{cbr_forward.1} parent=5 // pred_fallthru
        _
      %p167 = scmp.lt.s32.totalorder %s10, 4
      // Predicated region
      $region25: #{cbr_forward.1} parent=5 // pred_check
        %p168 = pneg %p167
      $region26: #{cbr_forward.1} parent=5 // pred_check_branch
        %170 = sbr.rel (%p168) target = $region28
      $region27: #{cbr_forward.1} parent=5 // pred_region
        // Predicated region
        $region29: #{cbr_forward.1} parent=27 // pred_check
          %p171 = pneg %p67
        $region30: #{cbr_forward.1} parent=27 // pred_check_branch
          %173 = sbr.rel (%p171) target = $region32
        $region31: #{cbr_forward.1} parent=27 // pred_region
          %s174 = sand.u32 %s57, 1
          %s175 = sand.u32 %s57, 1
          %s176 = smul.addr %s175, 256
          %s177 = scalar_lea.vmem [#allocation7], %s176
          %s178 = ssub.s32 1, %s17
          %s179 = smul.u32 %s18, %s178
          %s180 = smul.u32 4, %s179
          %s181 = smul.addr %s180, 4
          %s182 = scalar_lea.vmem %s1, %s181
          // Predicated region
          $region33: #{cbr_forward.1} parent=31 // pred_check
            _
          $region34: #{cbr_forward.1} parent=31 // pred_check_branch
            %184 = sbr.rel (0) target = $region36
          $region35: #{cbr_forward.1} parent=31 // pred_region
            // Predicated region
            $region37: #{cbr_forward.1} parent=35 // pred_check
              _
            $region38: #{cbr_forward.1} parent=35 // pred_check_branch
              %186 = sbr.rel (0) target = $region40
            $region39: #{cbr_forward.1} parent=35 // pred_region
              loop: start=0, step=1, limit=1
              $region41: #{cbr_forward.1} parent=39 // loop_pre_header
                _
              $region42: #{cbr_forward.1} parent=39 // loop_header
                %s188 = sphi 0, %s192
                %p189 = scmp.ge.s32.totalorder %s188, 1
                %s193 = sphi %s182, %s182
                %s194 = sphi %s177, %s177
              $region43: #{cbr_forward.1} parent=39 // loop_header_branch
                %191 = sbr.rel (%p189) target = $region47
              $region44: #{cbr_forward.1} parent=39 // loop_body
                %v195 = vld [vmem:[%s193] sm:$0xff]
                %196 = vst [vmem:[%s194] sm:$0xff] %v195
                %v197 = vld [vmem:[%s193 + $0x8] sm:$0xff]
                %198 = vst [vmem:[%s194 + $0x8] sm:$0xff] %v197
                %v199 = vld [vmem:[%s193 + $0x20] sm:$0xff]
                %200 = vst [vmem:[%s194 + $0x10] sm:$0xff] %v199
                %v201 = vld [vmem:[%s193 + $0x28] sm:$0xff]
                %202 = vst [vmem:[%s194 + $0x18] sm:$0xff] %v201
                %v203 = vld [vmem:[%s193 + $0x40] sm:$0xff]
                %204 = vst [vmem:[%s194 + $0x20] sm:$0xff] %v203
                %v205 = vld [vmem:[%s193 + $0x48] sm:$0xff]
                %206 = vst [vmem:[%s194 + $0x28] sm:$0xff] %v205
                %v207 = vld [vmem:[%s193 + $0x60] sm:$0xff]
                %208 = vst [vmem:[%s194 + $0x30] sm:$0xff] %v207
                %v209 = vld [vmem:[%s193 + $0x68] sm:$0xff]
                %210 = vst [vmem:[%s194 + $0x38] sm:$0xff] %v209
                %v211 = vld [vmem:[%s193 + $0x80] sm:$0xff]
                %212 = vst [vmem:[%s194 + $0x40] sm:$0xff] %v211
                %v213 = vld [vmem:[%s193 + $0x88] sm:$0xff]
                %214 = vst [vmem:[%s194 + $0x48] sm:$0xff] %v213
                %v215 = vld [vmem:[%s193 + $0xa0] sm:$0xff]
                %216 = vst [vmem:[%s194 + $0x50] sm:$0xff] %v215
                %v217 = vld [vmem:[%s193 + $0xa8] sm:$0xff]
                %218 = vst [vmem:[%s194 + $0x58] sm:$0xff] %v217
                %v219 = vld [vmem:[%s193 + $0xc0] sm:$0xff]
                %220 = vst [vmem:[%s194 + $0x60] sm:$0xff] %v219
                %v221 = vld [vmem:[%s193 + $0xc8] sm:$0xff]
                %222 = vst [vmem:[%s194 + $0x68] sm:$0xff] %v221
                %v223 = vld [vmem:[%s193 + $0xe0] sm:$0xff]
                %224 = vst [vmem:[%s194 + $0x70] sm:$0xff] %v223
                %v225 = vld [vmem:[%s193 + $0xe8] sm:$0xff]
                %226 = vst [vmem:[%s194 + $0x78] sm:$0xff] %v225
                %v227 = vld [vmem:[%s193 + $0x100] sm:$0xff]
                %228 = vst [vmem:[%s194 + $0x80] sm:$0xff] %v227
                %v229 = vld [vmem:[%s193 + $0x108] sm:$0xff]
                %230 = vst [vmem:[%s194 + $0x88] sm:$0xff] %v229
                %v231 = vld [vmem:[%s193 + $0x120] sm:$0xff]
                %232 = vst [vmem:[%s194 + $0x90] sm:$0xff] %v231
                %v233 = vld [vmem:[%s193 + $0x128] sm:$0xff]
                %234 = vst [vmem:[%s194 + $0x98] sm:$0xff] %v233
                %v235 = vld [vmem:[%s193 + $0x140] sm:$0xff]
                %236 = vst [vmem:[%s194 + $0xa0] sm:$0xff] %v235
                %v237 = vld [vmem:[%s193 + $0x148] sm:$0xff]
                %238 = vst [vmem:[%s194 + $0xa8] sm:$0xff] %v237
                %v239 = vld [vmem:[%s193 + $0x160] sm:$0xff]
                %240 = vst [vmem:[%s194 + $0xb0] sm:$0xff] %v239
                %v241 = vld [vmem:[%s193 + $0x168] sm:$0xff]
                %242 = vst [vmem:[%s194 + $0xb8] sm:$0xff] %v241
                %v243 = vld [vmem:[%s193 + $0x180] sm:$0xff]
                %244 = vst [vmem:[%s194 + $0xc0] sm:$0xff] %v243
                %v245 = vld [vmem:[%s193 + $0x188] sm:$0xff]
                %246 = vst [vmem:[%s194 + $0xc8] sm:$0xff] %v245
                %v247 = vld [vmem:[%s193 + $0x1a0] sm:$0xff]
                %248 = vst [vmem:[%s194 + $0xd0] sm:$0xff] %v247
                %v249 = vld [vmem:[%s193 + $0x1a8] sm:$0xff]
                %250 = vst [vmem:[%s194 + $0xd8] sm:$0xff] %v249
                %v251 = vld [vmem:[%s193 + $0x1c0] sm:$0xff]
                %252 = vst [vmem:[%s194 + $0xe0] sm:$0xff] %v251
                %v253 = vld [vmem:[%s193 + $0x1c8] sm:$0xff]
                %254 = vst [vmem:[%s194 + $0xe8] sm:$0xff] %v253
                %v255 = vld [vmem:[%s193 + $0x1e0] sm:$0xff]
                %256 = vst [vmem:[%s194 + $0xf0] sm:$0xff] %v255
                %v257 = vld [vmem:[%s193 + $0x1e8] sm:$0xff]
                %258 = vst [vmem:[%s194 + $0xf8] sm:$0xff] %v257
              $region45: #{cbr_forward.1} parent=39 // loop_footer
                %s192 = sadd.s32 1, %s188
              $region46: #{cbr_forward.1} parent=39 // loop_footer_branch
                %187 = sbr.rel target = $region42
              $region47: #{cbr_forward.1} parent=39 // loop_exit
                _
            $region40: #{cbr_forward.1} parent=35 // pred_fallthru
              _
            // Predicated region
            $region48: #{cbr_forward.1} parent=35 // pred_check
              _
            $region49: #{cbr_forward.1} parent=35 // pred_check_branch
              %260 = sbr.rel target = $region51
            $region50: #{cbr_forward.1} parent=35 // pred_region
              _
            $region51: #{cbr_forward.1} parent=35 // pred_fallthru
              _
          $region36: #{cbr_forward.1} parent=31 // pred_fallthru
            _
          %261 = vnop
        $region32: #{cbr_forward.1} parent=27 // pred_fallthru
          _
      $region28: #{cbr_forward.1} parent=5 // pred_fallthru
        _
      %p262 = scmp.le.s32.totalorder 1, %s10
      %p263 = scmp.lt.s32.totalorder %s10, 5
      %p264 = pnand %p262, %p263
      %p265 = pneg %p264
      // Predicated region
      $region52: #{cbr_forward.1} parent=5 // pred_check
        _
      $region53: #{cbr_forward.1} parent=5 // pred_check_branch
        %267 = sbr.rel (%p264) target = $region55
      $region54: #{cbr_forward.1} parent=5 // pred_region
        %s268 = ssub.s32 %s10, 1
        %s269 = sand.u32 %s60, 1
        %s270 = sand.u32 %s60, 1
        %s271 = smul.addr %s270, 256
        %s272 = scalar_lea.vmem [#allocation7], %s271
        // Predicated region
        $region56: #{cbr_forward.1} parent=54 // pred_check
          %p273 = pneg %p73
        $region57: #{cbr_forward.1} parent=54 // pred_check_branch
          %275 = sbr.rel (%p273) target = $region59
        $region58: #{cbr_forward.1} parent=54 // pred_region
          _
        $region59: #{cbr_forward.1} parent=54 // pred_fallthru
          _
        %p276 = pneg %p43
        %p277 = pneg %p40
        %s278 = sand.u32 %s60, 1
        %s279 = sand.u32 %s60, 1
        %s280 = smul.addr %s279, 256
        %s281 = scalar_lea.vmem [#allocation7], %s280
        %p282 = pneg %p73
        %p283 = pneg %p70
        %p284 = pneg %p94
        %p285 = pneg %p91
        %p286 = pneg %p115
        %p287 = pneg %p112
        %p288 = pneg %p143
        %p289 = pneg %p140
        %s290 = smul.u32 %s20, %s19
        %s291 = smul.u32 4, %s290
        %p292 = scmp.lt.s32.totalorder %s291, 7
        %s293 = scalar_select %p292, %s291, 7
        %s294 = smul.addr %s293, 8
        %s295 = scalar_lea.vmem %s4, %s294
        %s296 = ssub.s32 1, %s19
        %s297 = smul.u32 %s20, %s296
        %s298 = smul.u32 4, %s297
        %s299 = smul.u32 %s20, %s19
        %s300 = smul.u32 4, %s299
        %p301 = scmp.lt.s32.totalorder %s300, 7
        %s302 = scalar_select %p301, %s300, 7
        %s303 = smul.addr %s302, 8
        %s304 = scalar_lea.vmem %s4, %s303
        %s305 = smul.u32 %s20, %s19
        %s306 = smul.u32 4, %s305
        %p308 = scmp.eq.s32.totalorder %s19, 0
        // Predicated region
        $region60: #{cbr_forward.1} parent=54 // pred_check
          %p309 = pneg %p308
        $region61: #{cbr_forward.1} parent=54 // pred_check_branch
          %311 = sbr.rel (%p309) target = $region63
        $region62: #{cbr_forward.1} parent=54 // pred_region
          %p312 = scmp.eq.s32.totalorder %s20, 0
          // Predicated region
          $region64: #{cbr_forward.1} parent=62 // pred_check
            %p313 = pneg %p312
          $region65: #{cbr_forward.1} parent=62 // pred_check_branch
            %315 = sbr.rel (%p313) target = $region67
          $region66: #{cbr_forward.1} parent=62 // pred_region
            %316 = vst [vmem:[#allocation3] sm:$0xff] 0.0
            %317 = vst [vmem:[#allocation3 + $0x8] sm:$0xff] 0.0
            %318 = vst [vmem:[#allocation3 + $0x10] sm:$0xff] 0.0
            %319 = vst [vmem:[#allocation3 + $0x18] sm:$0xff] 0.0
            %320 = vst [vmem:[#allocation4] sm:$0xff] 0.0
            %321 = vst [vmem:[#allocation4 + $0x8] sm:$0xff] 0.0
            %322 = vst [vmem:[#allocation4 + $0x10] sm:$0xff] 0.0
            %323 = vst [vmem:[#allocation4 + $0x18] sm:$0xff] 0.0
          $region67: #{cbr_forward.1} parent=62 // pred_fallthru
            _
          %v324 = vld [vmem:[%s0] sm:$0xf]
          %v325 = vld [vmem:[%s272] sm:$0xff]
          %v326 = vld [vmem:[%s272 + $0x8] sm:$0xff]
          %v327 = vld [vmem:[%s272 + $0x10] sm:$0xff]
          %v328 = vld [vmem:[%s272 + $0x18] sm:$0xff]
          %v329 = vld [vmem:[%s272 + $0x20] sm:$0xff]
          %v330 = vld [vmem:[%s272 + $0x28] sm:$0xff]
          %v331 = vld [vmem:[%s272 + $0x30] sm:$0xff]
          %v332 = vld [vmem:[%s272 + $0x38] sm:$0xff]
          %v333 = vld [vmem:[%s272 + $0x40] sm:$0xff]
          %v334 = vld [vmem:[%s272 + $0x48] sm:$0xff]
          %v335 = vld [vmem:[%s272 + $0x50] sm:$0xff]
          %v336 = vld [vmem:[%s272 + $0x58] sm:$0xff]
          %v337 = vld [vmem:[%s272 + $0x60] sm:$0xff]
          %v338 = vld [vmem:[%s272 + $0x68] sm:$0xff]
          %v339 = vld [vmem:[%s272 + $0x70] sm:$0xff]
          %v340 = vld [vmem:[%s272 + $0x78] sm:$0xff]
          %v341 = vld [vmem:[%s272 + $0x80] sm:$0xff]
          %v342 = vld [vmem:[%s272 + $0x88] sm:$0xff]
          %v343 = vld [vmem:[%s272 + $0x90] sm:$0xff]
          %v344 = vld [vmem:[%s272 + $0x98] sm:$0xff]
          %v345 = vld [vmem:[%s272 + $0xa0] sm:$0xff]
          %v346 = vld [vmem:[%s272 + $0xa8] sm:$0xff]
          %v347 = vld [vmem:[%s272 + $0xb0] sm:$0xff]
          %v348 = vld [vmem:[%s272 + $0xb8] sm:$0xff]
          %v349 = vld [vmem:[%s272 + $0xc0] sm:$0xff]
          %v350 = vld [vmem:[%s272 + $0xc8] sm:$0xff]
          %v351 = vld [vmem:[%s272 + $0xd0] sm:$0xff]
          %v352 = vld [vmem:[%s272 + $0xd8] sm:$0xff]
          %v353 = vld [vmem:[%s272 + $0xe0] sm:$0xff]
          %v354 = vld [vmem:[%s272 + $0xe8] sm:$0xff]
          %v355 = vld [vmem:[%s272 + $0xf0] sm:$0xff]
          %v356 = vld [vmem:[%s272 + $0xf8] sm:$0xff]
          %v389 = vunpack.c.l.b16 %v325
          %v390 = vunpack.c.h.b16 %v325
          %v391 = vunpack.c.l.b16 %v326
          %v392 = vunpack.c.h.b16 %v326
          %v393 = vunpack.c.l.b16 %v327
          %v394 = vunpack.c.h.b16 %v327
          %v395 = vunpack.c.l.b16 %v328
          %v396 = vunpack.c.h.b16 %v328
          %v397 = vunpack.c.l.b16 %v329
          %v398 = vunpack.c.h.b16 %v329
          %v399 = vunpack.c.l.b16 %v330
          %v400 = vunpack.c.h.b16 %v330
          %v401 = vunpack.c.l.b16 %v331
          %v402 = vunpack.c.h.b16 %v331
          %v403 = vunpack.c.l.b16 %v332
          %v404 = vunpack.c.h.b16 %v332
          %v405 = vunpack.c.l.b16 %v333
          %v406 = vunpack.c.h.b16 %v333
          %v407 = vunpack.c.l.b16 %v334
          %v408 = vunpack.c.h.b16 %v334
          %v409 = vunpack.c.l.b16 %v335
          %v410 = vunpack.c.h.b16 %v335
          %v411 = vunpack.c.l.b16 %v336
          %v412 = vunpack.c.h.b16 %v336
          %v413 = vunpack.c.l.b16 %v337
          %v414 = vunpack.c.h.b16 %v337
          %v415 = vunpack.c.l.b16 %v338
          %v416 = vunpack.c.h.b16 %v338
          %v417 = vunpack.c.l.b16 %v339
          %v418 = vunpack.c.h.b16 %v339
          %v419 = vunpack.c.l.b16 %v340
          %v420 = vunpack.c.h.b16 %v340
          %v421 = vunpack.c.l.b16 %v341
          %v422 = vunpack.c.h.b16 %v341
          %v423 = vunpack.c.l.b16 %v342
          %v424 = vunpack.c.h.b16 %v342
          %v425 = vunpack.c.l.b16 %v343
          %v426 = vunpack.c.h.b16 %v343
          %v427 = vunpack.c.l.b16 %v344
          %v428 = vunpack.c.h.b16 %v344
          %v429 = vunpack.c.l.b16 %v345
          %v430 = vunpack.c.h.b16 %v345
          %v431 = vunpack.c.l.b16 %v346
          %v432 = vunpack.c.h.b16 %v346
          %v433 = vunpack.c.l.b16 %v347
          %v434 = vunpack.c.h.b16 %v347
          %v435 = vunpack.c.l.b16 %v348
          %v436 = vunpack.c.h.b16 %v348
          %v437 = vunpack.c.l.b16 %v349
          %v438 = vunpack.c.h.b16 %v349
          %v439 = vunpack.c.l.b16 %v350
          %v440 = vunpack.c.h.b16 %v350
          %v441 = vunpack.c.l.b16 %v351
          %v442 = vunpack.c.h.b16 %v351
          %v443 = vunpack.c.l.b16 %v352
          %v444 = vunpack.c.h.b16 %v352
          %v445 = vunpack.c.l.b16 %v353
          %v446 = vunpack.c.h.b16 %v353
          %v447 = vunpack.c.l.b16 %v354
          %v448 = vunpack.c.h.b16 %v354
          %v449 = vunpack.c.l.b16 %v355
          %v450 = vunpack.c.h.b16 %v355
          %v451 = vunpack.c.l.b16 %v356
          %v452 = vunpack.c.h.b16 %v356
          %v453 = vpack.c.b16 %v393, %v389
          %v454 = vpack.c.b16 %v394, %v390
          %v455 = vpack.c.b16 %v395, %v391
          %v456 = vpack.c.b16 %v396, %v392
          %v457 = vpack.c.b16 %v401, %v397
          %v458 = vpack.c.b16 %v402, %v398
          %v459 = vpack.c.b16 %v403, %v399
          %v460 = vpack.c.b16 %v404, %v400
          %v461 = vpack.c.b16 %v409, %v405
          %v462 = vpack.c.b16 %v410, %v406
          %v463 = vpack.c.b16 %v411, %v407
          %v464 = vpack.c.b16 %v412, %v408
          %v465 = vpack.c.b16 %v417, %v413
          %v466 = vpack.c.b16 %v418, %v414
          %v467 = vpack.c.b16 %v419, %v415
          %v468 = vpack.c.b16 %v420, %v416
          %v469 = vpack.c.b16 %v425, %v421
          %v470 = vpack.c.b16 %v426, %v422
          %v471 = vpack.c.b16 %v427, %v423
          %v472 = vpack.c.b16 %v428, %v424
          %v473 = vpack.c.b16 %v433, %v429
          %v474 = vpack.c.b16 %v434, %v430
          %v475 = vpack.c.b16 %v435, %v431
          %v476 = vpack.c.b16 %v436, %v432
          %v477 = vpack.c.b16 %v441, %v437
          %v478 = vpack.c.b16 %v442, %v438
          %v479 = vpack.c.b16 %v443, %v439
          %v480 = vpack.c.b16 %v444, %v440
          %v481 = vpack.c.b16 %v449, %v445
          %v482 = vpack.c.b16 %v450, %v446
          %v483 = vpack.c.b16 %v451, %v447
          %v484 = vpack.c.b16 %v452, %v448
          %517 = vmatprep.subr.bf16.mxu0 %v454
          %518 = vmatpush1.bf16.msra.mxu0 %v453
          %519 = vmatprep.subr.bf16.mxu0 %v458
          %520 = vmatpush1.bf16.msra.mxu0 %v457
          %521 = vmatprep.subr.bf16.mxu0 %v462
          %522 = vmatpush1.bf16.msra.mxu0 %v461
          %523 = vmatprep.subr.bf16.mxu0 %v466
          %524 = vmatpush1.bf16.msra.mxu0 %v465
          %525 = vmatprep.subr.bf16.mxu0 %v470
          %526 = vmatpush1.bf16.msra.mxu0 %v469
          %527 = vmatprep.subr.bf16.mxu0 %v474
          %528 = vmatpush1.bf16.msra.mxu0 %v473
          %529 = vmatprep.subr.bf16.mxu0 %v478
          %530 = vmatpush1.bf16.msra.mxu0 %v477
          %531 = vmatprep.subr.bf16.mxu0 %v482
          %532 = vmatpush1.bf16.msra.mxu0 %v481
          %533 = vmatprep.subr.bf16.mxu0 0
          %534 = vmatpush1.bf16.msra.mxu0 0
          %535 = vmatprep.subr.bf16.mxu0 0
          %536 = vmatpush1.bf16.msra.mxu0 0
          %537 = vmatprep.subr.bf16.mxu0 0
          %538 = vmatpush1.bf16.msra.mxu0 0
          %539 = vmatprep.subr.bf16.mxu0 0
          %540 = vmatpush1.bf16.msra.mxu0 0
          %541 = vmatprep.subr.bf16.mxu0 0
          %542 = vmatpush1.bf16.msra.mxu0 0
          %543 = vmatprep.subr.bf16.mxu0 0
          %544 = vmatpush1.bf16.msra.mxu0 0
          %545 = vmatprep.subr.bf16.mxu0 0
          %546 = vmatpush1.bf16.msra.mxu0 0
          %547 = vmatprep.subr.bf16.mxu0 0
          %548 = vmatpush1.bf16.msra.mxu0 0
          %549 = vmatprep.mubr.bf16.mxu0 0
          %550 = vmatmul.mubr.bf16.gmra.mrb[0].mxu0 %v324
          %v551 = vpop.f32.mrb[0].mxu0
          %v552 = vadd.f32 0.0, %v551
          %v553 = vpop.f32.mrb[0].mxu0
          %v554 = vadd.f32 0.0, %v553
          %v555 = vpop.f32.mrb[0].mxu0
          %v556 = vpop.f32.mrb[0].mxu0
          %557 = vdwg.mxu0
          %558 = vmatprep.subr.bf16.mxu0 %v456
          %559 = vmatpush1.bf16.msra.mxu0 %v455
          %560 = vmatprep.subr.bf16.mxu0 %v460
          %561 = vmatpush1.bf16.msra.mxu0 %v459
          %562 = vmatprep.subr.bf16.mxu0 %v464
          %563 = vmatpush1.bf16.msra.mxu0 %v463
          %564 = vmatprep.subr.bf16.mxu0 %v468
          %565 = vmatpush1.bf16.msra.mxu0 %v467
          %566 = vmatprep.subr.bf16.mxu0 %v472
          %567 = vmatpush1.bf16.msra.mxu0 %v471
          %568 = vmatprep.subr.bf16.mxu0 %v476
          %569 = vmatpush1.bf16.msra.mxu0 %v475
          %570 = vmatprep.subr.bf16.mxu0 %v480
          %571 = vmatpush1.bf16.msra.mxu0 %v479
          %572 = vmatprep.subr.bf16.mxu0 %v484
          %573 = vmatpush1.bf16.msra.mxu0 %v483
          %574 = vmatprep.subr.bf16.mxu0 0
          %575 = vmatpush1.bf16.msra.mxu0 0
          %576 = vmatprep.subr.bf16.mxu0 0
          %577 = vmatpush1.bf16.msra.mxu0 0
          %578 = vmatprep.subr.bf16.mxu0 0
          %579 = vmatpush1.bf16.msra.mxu0 0
          %580 = vmatprep.subr.bf16.mxu0 0
          %581 = vmatpush1.bf16.msra.mxu0 0
          %582 = vmatprep.subr.bf16.mxu0 0
          %583 = vmatpush1.bf16.msra.mxu0 0
          %584 = vmatprep.subr.bf16.mxu0 0
          %585 = vmatpush1.bf16.msra.mxu0 0
          %586 = vmatprep.subr.bf16.mxu0 0
          %587 = vmatpush1.bf16.msra.mxu0 0
          %588 = vmatprep.subr.bf16.mxu0 0
          %589 = vmatpush1.bf16.msra.mxu0 0
          %590 = vmatprep.mubr.bf16.mxu0 0
          %591 = vmatmul.mubr.bf16.gmra.mrb[0].mxu0 %v324
          %v592 = vpop.f32.mrb[0].mxu0
          %v593 = vadd.f32 0.0, %v592
          %v594 = vpop.f32.mrb[0].mxu0
          %v595 = vadd.f32 0.0, %v594
          %v596 = vpop.f32.mrb[0].mxu0
          %v597 = vpop.f32.mrb[0].mxu0
          %598 = vdwg.mxu0
          %s599 = smul.u32 %s20, 4
          %s600 = smul.addr %s599, 8
          %s601 = scalar_lea.vmem [#allocation2], %s600
          %602 = vst [vmem:[%s601] sm:$0xff] %v552
          %603 = vst [vmem:[%s601 + $0x8] sm:$0xff] %v554
          %604 = vst [vmem:[%s601 + $0x10] sm:$0xff] %v593
          %605 = vst [vmem:[%s601 + $0x18] sm:$0xff] %v595
          %v606 = vld [vmem:[#allocation3] sm:$0xff]
          %v607 = vld [vmem:[#allocation3 + $0x8] sm:$0xff]
          %v608 = vld [vmem:[#allocation3 + $0x10] sm:$0xff]
          %v609 = vld [vmem:[#allocation3 + $0x18] sm:$0xff]
          %v610 = vadd.f32 %v606, %v552
          %v611 = vadd.f32 %v607, %v554
          %v612 = vadd.f32 %v608, %v593
          %v613 = vadd.f32 %v609, %v595
          %614 = vst [vmem:[#allocation3] sm:$0xff] %v610
          %615 = vst [vmem:[#allocation3 + $0x8] sm:$0xff] %v611
          %616 = vst [vmem:[#allocation3 + $0x10] sm:$0xff] %v612
          %617 = vst [vmem:[#allocation3 + $0x18] sm:$0xff] %v613
          %v618 = vld [vmem:[#allocation4] sm:$0xff]
          %v619 = vld [vmem:[#allocation4 + $0x8] sm:$0xff]
          %v620 = vld [vmem:[#allocation4 + $0x10] sm:$0xff]
          %v621 = vld [vmem:[#allocation4 + $0x18] sm:$0xff]
          %v622 = vmul.f32 %v552, %v552
          %v623 = vmul.f32 %v554, %v554
          %v624 = vmul.f32 %v593, %v593
          %v625 = vmul.f32 %v595, %v595
          %v626 = vadd.f32 %v618, %v622
          %v627 = vadd.f32 %v619, %v623
          %v628 = vadd.f32 %v620, %v624
          %v629 = vadd.f32 %v621, %v625
          %630 = vst [vmem:[#allocation4] sm:$0xff] %v626
          %631 = vst [vmem:[#allocation4 + $0x8] sm:$0xff] %v627
          %632 = vst [vmem:[#allocation4 + $0x10] sm:$0xff] %v628
          %633 = vst [vmem:[#allocation4 + $0x18] sm:$0xff] %v629
        $region63: #{cbr_forward.1} parent=54 // pred_fallthru
          _
        %p634 = scmp.eq.s32.totalorder %s19, 1
        // Predicated region
        $region68: #{cbr_forward.1} parent=54 // pred_check
          %p635 = pneg %p634
        $region69: #{cbr_forward.1} parent=54 // pred_check_branch
          %637 = sbr.rel (%p635) target = $region71
        $region70: #{cbr_forward.1} parent=54 // pred_region
          %p638 = scmp.eq.s32.totalorder %s20, 0
          // Predicated region
          $region72: #{cbr_forward.1} parent=70 // pred_check
            %p639 = pneg %p638
          $region73: #{cbr_forward.1} parent=70 // pred_check_branch
            %641 = sbr.rel (%p639) target = $region75
          $region74: #{cbr_forward.1} parent=70 // pred_region
            %v642 = vld [vmem:[#allocation3] sm:$0xff]
            %v643 = vld [vmem:[#allocation3 + $0x8] sm:$0xff]
            %v644 = vld [vmem:[#allocation3 + $0x10] sm:$0xff]
            %v645 = vld [vmem:[#allocation3 + $0x18] sm:$0xff]
            %v646 = vadd.f32 %v642, %v643
            %v647 = vadd.f32 %v646, %v644
            %v648 = vadd.f32 %v647, %v645
            %649 = vadd.xlane.f32.xlu0 %v648
            %v650 = vpop.xlane.xlu0 %649
            %v651 = vld [vmem:[#allocation4] sm:$0xff]
            %v652 = vld [vmem:[#allocation4 + $0x8] sm:$0xff]
            %v653 = vld [vmem:[#allocation4 + $0x10] sm:$0xff]
            %v654 = vld [vmem:[#allocation4 + $0x18] sm:$0xff]
            %v655 = vadd.f32 %v651, %v652
            %v656 = vadd.f32 %v655, %v653
            %v657 = vadd.f32 %v656, %v654
            %658 = vadd.xlane.f32.xlu0 %v657
            %v659 = vpop.xlane.xlu0 %658
            %v660 = vmul.f32 %v650, 0.0009765625
            %v661 = vmul.f32 %v659, 0.0009765625
            %v662 = vmul.f32 %v660, %v660
            %v663 = vsub.f32 %v661, %v662
            %v664 = vmax.f32 %v663, 0.0
            %v665 = vadd.f32 %v664, 0.001
            %v666 = vrsqrt.pop %v665
            %v667 = vld [vmem:[%s2] sm:$0xff]
            %v668 = vmul.f32 %v666, %v667
            %vm669 = vcmask 7168
            %670 = vst.msk [vmem:[#allocation5] sm:$0xff] %vm669, %v668
            %v671 = vld [vmem:[%s3] sm:$0xff]
            %v672 = vmul.f32 %v660, %v668
            %v673 = vsub.f32 %v671, %v672
            %674 = vst.msk [vmem:[#allocation6] sm:$0xff] %vm669, %v673
          $region75: #{cbr_forward.1} parent=70 // pred_fallthru
            _
          %s675 = smul.u32 %s20, 4
          %s676 = smul.addr %s675, 8
          %s677 = scalar_lea.vmem [#allocation2], %s676
          %v678 = vld [vmem:[%s677] sm:$0xff]
          %v679 = vld [vmem:[%s677 + $0x8] sm:$0xff]
          %v680 = vld [vmem:[%s677 + $0x10] sm:$0xff]
          %v681 = vld [vmem:[%s677 + $0x18] sm:$0xff]
          %v682 = vld [vmem:[#allocation5] sm:$0xff]
          %684 = vset.pattern.permute.xlu0 0
          %685 = vperm.xlu0 %684, %v682
          %v686 = vpop.permute.xlu0 %685
          %v688 = vmul.f32 %v678, %v686
          %v689 = vmul.f32 %v679, %v686
          %v690 = vmul.f32 %v680, %v686
          %v691 = vmul.f32 %v681, %v686
          %v692 = vld [vmem:[#allocation6] sm:$0xff]
          %694 = vset.pattern.permute.xlu0 0
          %695 = vperm.xlu0 %694, %v692
          %v696 = vpop.permute.xlu0 %695
          %v698 = vadd.f32 %v688, %v696
          %v699 = vadd.f32 %v689, %v696
          %v700 = vadd.f32 %v690, %v696
          %v701 = vadd.f32 %v691, %v696
          %v702 = vmax.f32 %v698, 0.0
          %v703 = vmax.f32 %v699, 0.0
          %v704 = vmax.f32 %v700, 0.0
          %v705 = vmax.f32 %v701, 0.0
          %706 = vst [vmem:[%s304] sm:$0xff] %v702
          %707 = vst [vmem:[%s304 + $0x8] sm:$0xff] %v703
          %708 = vst [vmem:[%s304 + $0x10] sm:$0xff] %v704
          %709 = vst [vmem:[%s304 + $0x18] sm:$0xff] %v705
        $region71: #{cbr_forward.1} parent=54 // pred_fallthru
          _
        %s710 = smul.u32 %s20, %s19
        %s711 = smul.u32 4, %s710
        %p712 = scmp.lt.s32.totalorder %s711, 7
        %s713 = scalar_select %p712, %s711, 7
        %s714 = smul.addr %s713, 8
        %s715 = scalar_lea.vmem %s4, %s714
        // Predicated region
        $region76: #{cbr_forward.1} parent=54 // pred_check
          %p716 = pneg %p140
        $region77: #{cbr_forward.1} parent=54 // pred_check_branch
          %718 = sbr.rel (%p716) target = $region79
        $region78: #{cbr_forward.1} parent=54 // pred_region
          %s719 = smul.u32 %s20, %s19
          %s720 = smul.u32 4, %s719
        $region79: #{cbr_forward.1} parent=54 // pred_fallthru
          _
      $region55: #{cbr_forward.1} parent=5 // pred_fallthru
        _
      %p721 = scmp.le.s32.totalorder 2, %s10
      // Predicated region
      $region80: #{cbr_forward.1} parent=5 // pred_check
        %p722 = pneg %p721
      $region81: #{cbr_forward.1} parent=5 // pred_check_branch
        %724 = sbr.rel (%p722) target = $region83
      $region82: #{cbr_forward.1} parent=5 // pred_region
        %s725 = ssub.s32 %s10, 2
        // Predicated region
        $region84: #{cbr_forward.1} parent=82 // pred_check
          %p726 = pneg %p146
        $region85: #{cbr_forward.1} parent=82 // pred_check_branch
          %728 = sbr.rel (%p726) target = $region87
        $region86: #{cbr_forward.1} parent=82 // pred_region
          %s729 = smul.u32 %s22, %s21
          %s730 = smul.u32 4, %s729
          %p731 = scmp.lt.s32.totalorder %s730, 7
          %s732 = scalar_select %p731, %s730, 7
          %s733 = smul.addr %s732, 8
          %s734 = scalar_lea.vmem %s4, %s733
        $region87: #{cbr_forward.1} parent=82 // pred_fallthru
          _
      $region83: #{cbr_forward.1} parent=5 // pred_fallthru
        _
    $region6: #{cbr_forward.1} parent=1 // loop_footer
      %s14 = sadd.s32 1, %s10
    $region7: #{cbr_forward.1} parent=1 // loop_footer_branch
      %9 = sbr.rel target = $region3
    $region8: #{cbr_forward.1} parent=1 // loop_exit
      _

</llo_original>
